<compile_context>
chip_gen: v6e
topology: v6e:2x2x1
jax: 0.10.0
libtpu: 0.0.40
codegen_flags: <defaults>
</compile_context>

<pallas_src>
import functools

import jax
import jax.numpy as jnp
from jax.experimental import pallas as pl
from jax.experimental.pallas import tpu as pltpu

_OUT_PAD = 8  # lane padding of the final layer (out_dim=6 -> 8)


def _round_up(x: int, m: int) -> int:
    return ((x + m - 1) // m) * m


def _choose_tile(batch: int, tm_cap: int) -> int:
    """Batch-tile size: multiple of 16, near-even division of batch, and at
    least 2 blocks when the batch is large enough (v7x 2-TC sharding)."""
    n_blocks = max(-(-batch // tm_cap), 2 if batch >= 32 else 1)
    return _round_up(-(-batch // n_blocks), 16)


def _mlp_kernel(xl_ref, xr_ref,
                w1l_ref, w1r_ref, b1_ref,
                w2_ref, b2_ref,
                w3_ref, b3_ref,
                w4_ref, b4_ref,
                o_ref):
    xl = xl_ref[...]                       # (TM, 20) f32
    xr = xr_ref[...]                       # (TM, 20) f32

    # Layer 1: split contraction replaces the wrapper-side concat.
    h = (jnp.dot(xl, w1l_ref[...], preferred_element_type=jnp.float32)
         + jnp.dot(xr, w1r_ref[...], preferred_element_type=jnp.float32)
         + b1_ref[...])
    h = jnp.maximum(h, 0.0)

    # Layer 2
    h = jnp.dot(h, w2_ref[...], preferred_element_type=jnp.float32) + b2_ref[...]
    h = jnp.maximum(h, 0.0)

    # Layer 3
    h = jnp.dot(h, w3_ref[...], preferred_element_type=jnp.float32) + b3_ref[...]
    h = jnp.maximum(h, 0.0)

    # Layer 4 (6 real outputs, padded to 8 lanes)
    h = jnp.dot(h, w4_ref[...], preferred_element_type=jnp.float32) + b4_ref[...]

    o_ref[...] = h.astype(o_ref.dtype)


@functools.partial(jax.jit, static_argnames=("tm",))
def mlp_planner_forward(track_left, track_right, params, *, tm: int = 2048):
    """track_left/track_right: (B, n_track, 2) f32 -> (B, n_waypoints, 2) f32."""
    b, n_track, _ = track_left.shape
    feat = n_track * 2                        # 20 features per side
    out_dim = params["w4"].shape[1]           # 6
    n_waypoints = out_dim // 2

    # ---- batch tiling ----
    tm_eff = _choose_tile(b, tm)
    padded_b = _round_up(b, tm_eff)
    grid = padded_b // tm_eff

    # Inputs stay f32; only the (free, row-major) reshape happens here.
    xl = track_left.reshape(b, feat)
    xr = track_right.reshape(b, feat)
    if padded_b != b:
        pad = padded_b - b
        xl = jnp.pad(xl, ((0, pad), (0, 0)))
        xr = jnp.pad(xr, ((0, pad), (0, 0)))

    # ---- parameters: split w1, lane-pad the final layer to 8 outputs ----
    w1 = params["w1"]
    w1l, w1r = w1[:feat], w1[feat:]
    w2, w3 = params["w2"], params["w3"]
    d1, d2, d3 = w1.shape[1], w2.shape[1], w3.shape[1]

    w4 = jnp.zeros((d3, _OUT_PAD), jnp.float32).at[:, :out_dim].set(params["w4"])
    b4 = jnp.zeros((1, _OUT_PAD), jnp.float32).at[:, :out_dim].set(params["b4"])
    b1, b2, b3 = params["b1"], params["b2"], params["b3"]

    def resident(shape):
        # Whole-array block with a constant index_map: fetched once, stays
        # resident in VMEM across all grid steps.
        return pl.BlockSpec(shape, lambda i: (0, 0))

    weight_elems = 2 * feat * d1 + d1 * d2 + d2 * d3 + d3 * _OUT_PAD
    flops = 2 * padded_b * weight_elems
    bytes_accessed = (2 * padded_b * feat * 4                 # f32 inputs
                      + weight_elems * 4                      # f32 weights
                      + (d1 + d2 + d3 + _OUT_PAD) * 4         # f32 biases
                      + padded_b * _OUT_PAD * 4)              # f32 output

    out = pl.pallas_call(
        _mlp_kernel,
        out_shape=jax.ShapeDtypeStruct((padded_b, _OUT_PAD), jnp.float32),
        grid=(grid,),
        in_specs=[
            pl.BlockSpec((tm_eff, feat), lambda i: (i, 0)),   # xl tile
            pl.BlockSpec((tm_eff, feat), lambda i: (i, 0)),   # xr tile
            resident((feat, d1)), resident((feat, d1)), resident((1, d1)),
            resident((d1, d2)), resident((1, d2)),
            resident((d2, d3)), resident((1, d3)),
            resident((d3, _OUT_PAD)), resident((1, _OUT_PAD)),
        ],
        out_specs=pl.BlockSpec((tm_eff, _OUT_PAD), lambda i: (i, 0)),
        compiler_params=pltpu.CompilerParams(
            dimension_semantics=("parallel",)),
        cost_estimate=pl.CostEstimate(
            flops=flops, transcendentals=0, bytes_accessed=bytes_accessed),
    )(xl, xr, w1l, w1r, b1, w2, b2, w3, b3, w4, b4)

    return out[:b, :out_dim].reshape(b, n_waypoints, 2)


def init_params(key, n_track=10, n_waypoints=3):
    """Deterministic init mirroring nn.Linear default (uniform +/- 1/sqrt(fan_in)).

    Weights are stored (in_features, out_features) so y = x @ W + b.
    Only jnp arrays go in the dict (no Python ints -> safe under jit).
    """
    input_size = n_track * 2 * 2
    dims = [input_size, 128, 128, 64, n_waypoints * 2]
    params = {}
    keys = jax.random.split(key, 2 * (len(dims) - 1))
    for i in range(len(dims) - 1):
        fan_in, fan_out = dims[i], dims[i + 1]
        bound = 1.0 / float(fan_in) ** 0.5
        w = jax.random.uniform(keys[2 * i], (fan_in, fan_out),
                               minval=-bound, maxval=bound, dtype=jnp.float32)
        bb = jax.random.uniform(keys[2 * i + 1], (1, fan_out),
                                minval=-bound, maxval=bound, dtype=jnp.float32)
        params[f"w{i + 1}"] = w
        params[f"b{i + 1}"] = bb
    return params


def _reference_forward(track_left, track_right, params):
    """Pure-JAX f32 reference matching the torch module's math."""
    b = track_left.shape[0]
    x = jnp.concatenate(
        [track_left.reshape(b, -1), track_right.reshape(b, -1)], axis=1)
    h = jnp.maximum(x @ params["w1"] + params["b1"], 0.0)
    h = jnp.maximum(h @ params["w2"] + params["b2"], 0.0)
    h = jnp.maximum(h @ params["w3"] + params["b3"], 0.0)
    h = h @ params["w4"] + params["b4"]
    n_waypoints = params["w4"].shape[1] // 2
    return h.reshape(b, n_waypoints, 2)


if __name__ == "__main__":
    key = jax.random.PRNGKey(0)
    k_params, k_left, k_right = jax.random.split(key, 3)

    n_track, n_waypoints, batch = 10, 3, 8
    params = init_params(k_params, n_track=n_track, n_waypoints=n_waypoints)

    track_left = jax.random.normal(k_left, (batch, n_track, 2), dtype=jnp.float32)
    track_right = jax.random.normal(k_right, (batch, n_track, 2), dtype=jnp.float32)

    waypoints = mlp_planner_forward(track_left, track_right, params)
    waypoints = jax.block_until_ready(waypoints)

    ref = _reference_forward(track_left, track_right, params)
    assert waypoints.shape == (batch, n_waypoints, 2)
    # Tolerance covers the TPU MXU default-precision matmul path (bf16 passes).
    assert jnp.allclose(waypoints, ref, atol=2e-2, rtol=2e-2), (
        float(jnp.max(jnp.abs(waypoints - ref))))

    print("KERNEL_OK")
</pallas_src>

<mosaic_0001>
module attributes {stable_mosaic.version = 11 : i64} {
  func.func @_mlp_kernel(%arg0: i32, %arg1: memref<16x20xf32, #tpu.memory_space<vmem>>, %arg2: memref<16x20xf32, #tpu.memory_space<vmem>>, %arg3: memref<20x128xf32, #tpu.memory_space<vmem>>, %arg4: memref<20x128xf32, #tpu.memory_space<vmem>>, %arg5: memref<1x128xf32, #tpu.memory_space<vmem>>, %arg6: memref<128x128xf32, #tpu.memory_space<vmem>>, %arg7: memref<1x128xf32, #tpu.memory_space<vmem>>, %arg8: memref<128x64xf32, #tpu.memory_space<vmem>>, %arg9: memref<1x64xf32, #tpu.memory_space<vmem>>, %arg10: memref<64x8xf32, #tpu.memory_space<vmem>>, %arg11: memref<1x8xf32, #tpu.memory_space<vmem>>, %arg12: memref<16x8xf32, #tpu.memory_space<vmem>>) attributes {dimension_semantics = [#tpu.dimension_semantics<parallel>], iteration_bounds = array<i64: 1>, scalar_prefetch = 0 : i64, scratch_operands = 0 : i64, tpu.core_type = #tpu.core_type<tc>, window_params = [{transform_indices = @transform_0, window_bounds = array<i64: 16, 20>}, {transform_indices = @transform_1, window_bounds = array<i64: 16, 20>}, {pipeline_mode = #tpu.pipeline_mode<synchronous>, transform_indices = @transform_2, window_bounds = array<i64: 20, 128>}, {pipeline_mode = #tpu.pipeline_mode<synchronous>, transform_indices = @transform_3, window_bounds = array<i64: 20, 128>}, {pipeline_mode = #tpu.pipeline_mode<synchronous>, transform_indices = @transform_4, window_bounds = array<i64: 1, 128>}, {pipeline_mode = #tpu.pipeline_mode<synchronous>, transform_indices = @transform_5, window_bounds = array<i64: 128, 128>}, {pipeline_mode = #tpu.pipeline_mode<synchronous>, transform_indices = @transform_6, window_bounds = array<i64: 1, 128>}, {pipeline_mode = #tpu.pipeline_mode<synchronous>, transform_indices = @transform_7, window_bounds = array<i64: 128, 64>}, {pipeline_mode = #tpu.pipeline_mode<synchronous>, transform_indices = @transform_8, window_bounds = array<i64: 1, 64>}, {pipeline_mode = #tpu.pipeline_mode<synchronous>, transform_indices = @transform_9, window_bounds = array<i64: 64, 8>}, {pipeline_mode = #tpu.pipeline_mode<synchronous>, transform_indices = @transform_10, window_bounds = array<i64: 1, 8>}, {transform_indices = @transform_11, window_bounds = array<i64: 16, 8>}]} {
    %c0 = arith.constant 0 : index
    %c0_0 = arith.constant 0 : index
    %0 = vector.load %arg1[%c0, %c0_0] : memref<16x20xf32, #tpu.memory_space<vmem>>, vector<16x20xf32>
    %c0_1 = arith.constant 0 : index
    %c0_2 = arith.constant 0 : index
    %1 = vector.load %arg2[%c0_1, %c0_2] : memref<16x20xf32, #tpu.memory_space<vmem>>, vector<16x20xf32>
    %c0_3 = arith.constant 0 : index
    %c0_4 = arith.constant 0 : index
    %2 = vector.load %arg3[%c0_3, %c0_4] : memref<20x128xf32, #tpu.memory_space<vmem>>, vector<20x128xf32>
    %cst = arith.constant dense<0.000000e+00> : vector<16x128xf32>
    %3 = tpu.matmul %0, %2, %cst {dimension_numbers = #tpu.dot_dimension_numbers<[1], [0], [0], [1], [0, 0, 1, 1], [], []>} : vector<16x20xf32>, vector<20x128xf32>, vector<16x128xf32> -> vector<16x128xf32>
    %c0_5 = arith.constant 0 : index
    %c0_6 = arith.constant 0 : index
    %4 = vector.load %arg4[%c0_5, %c0_6] : memref<20x128xf32, #tpu.memory_space<vmem>>, vector<20x128xf32>
    %cst_7 = arith.constant dense<0.000000e+00> : vector<16x128xf32>
    %5 = tpu.matmul %1, %4, %cst_7 {dimension_numbers = #tpu.dot_dimension_numbers<[1], [0], [0], [1], [0, 0, 1, 1], [], []>} : vector<16x20xf32>, vector<20x128xf32>, vector<16x128xf32> -> vector<16x128xf32>
    %6 = arith.addf %3, %5 : vector<16x128xf32>
    %c0_8 = arith.constant 0 : index
    %c0_9 = arith.constant 0 : index
    %7 = vector.load %arg5[%c0_8, %c0_9] : memref<1x128xf32, #tpu.memory_space<vmem>>, vector<1x128xf32>
    %8 = vector.broadcast %7 : vector<1x128xf32> to vector<16x128xf32>
    %9 = arith.addf %6, %8 : vector<16x128xf32>
    %cst_10 = arith.constant 0.000000e+00 : f32
    %10 = vector.broadcast %cst_10 : f32 to vector<16x128xf32>
    %11 = arith.maximumf %9, %10 : vector<16x128xf32>
    %c0_11 = arith.constant 0 : index
    %c0_12 = arith.constant 0 : index
    %12 = vector.load %arg6[%c0_11, %c0_12] : memref<128x128xf32, #tpu.memory_space<vmem>>, vector<128x128xf32>
    %cst_13 = arith.constant dense<0.000000e+00> : vector<16x128xf32>
    %13 = tpu.matmul %11, %12, %cst_13 {dimension_numbers = #tpu.dot_dimension_numbers<[1], [0], [0], [1], [0, 0, 1, 1], [], []>} : vector<16x128xf32>, vector<128x128xf32>, vector<16x128xf32> -> vector<16x128xf32>
    %c0_14 = arith.constant 0 : index
    %c0_15 = arith.constant 0 : index
    %14 = vector.load %arg7[%c0_14, %c0_15] : memref<1x128xf32, #tpu.memory_space<vmem>>, vector<1x128xf32>
    %15 = vector.broadcast %14 : vector<1x128xf32> to vector<16x128xf32>
    %16 = arith.addf %13, %15 : vector<16x128xf32>
    %cst_16 = arith.constant 0.000000e+00 : f32
    %17 = vector.broadcast %cst_16 : f32 to vector<16x128xf32>
    %18 = arith.maximumf %16, %17 : vector<16x128xf32>
    %c0_17 = arith.constant 0 : index
    %c0_18 = arith.constant 0 : index
    %19 = vector.load %arg8[%c0_17, %c0_18] : memref<128x64xf32, #tpu.memory_space<vmem>>, vector<128x64xf32>
    %cst_19 = arith.constant dense<0.000000e+00> : vector<16x64xf32>
    %20 = tpu.matmul %18, %19, %cst_19 {dimension_numbers = #tpu.dot_dimension_numbers<[1], [0], [0], [1], [0, 0, 1, 1], [], []>} : vector<16x128xf32>, vector<128x64xf32>, vector<16x64xf32> -> vector<16x64xf32>
    %c0_20 = arith.constant 0 : index
    %c0_21 = arith.constant 0 : index
    %21 = vector.load %arg9[%c0_20, %c0_21] : memref<1x64xf32, #tpu.memory_space<vmem>>, vector<1x64xf32>
    %22 = vector.broadcast %21 : vector<1x64xf32> to vector<16x64xf32>
    %23 = arith.addf %20, %22 : vector<16x64xf32>
    %cst_22 = arith.constant 0.000000e+00 : f32
    %24 = vector.broadcast %cst_22 : f32 to vector<16x64xf32>
    %25 = arith.maximumf %23, %24 : vector<16x64xf32>
    %c0_23 = arith.constant 0 : index
    %c0_24 = arith.constant 0 : index
    %26 = vector.load %arg10[%c0_23, %c0_24] : memref<64x8xf32, #tpu.memory_space<vmem>>, vector<64x8xf32>
    %cst_25 = arith.constant dense<0.000000e+00> : vector<16x8xf32>
    %27 = tpu.matmul %25, %26, %cst_25 {dimension_numbers = #tpu.dot_dimension_numbers<[1], [0], [0], [1], [0, 0, 1, 1], [], []>} : vector<16x64xf32>, vector<64x8xf32>, vector<16x8xf32> -> vector<16x8xf32>
    %c0_26 = arith.constant 0 : index
    %c0_27 = arith.constant 0 : index
    %28 = vector.load %arg11[%c0_26, %c0_27] : memref<1x8xf32, #tpu.memory_space<vmem>>, vector<1x8xf32>
    %29 = vector.broadcast %28 : vector<1x8xf32> to vector<16x8xf32>
    %30 = arith.addf %27, %29 : vector<16x8xf32>
    %c0_28 = arith.constant 0 : index
    %c0_29 = arith.constant 0 : index
    %31 = vector.load %arg12[%c0_28, %c0_29] : memref<16x8xf32, #tpu.memory_space<vmem>>, vector<16x8xf32>
    tpu.vector_store %arg12[%c0_28, %c0_29], %30 {strides = array<i32>} : memref<16x8xf32, #tpu.memory_space<vmem>>, vector<16x8xf32>,
    return
  }
  func.func @transform_0(%arg0: i32) -> (i32, i32) {
    %c0_i32 = arith.constant 0 : i32
    %c0_i32_0 = arith.constant 0 : i32
    return %arg0, %c0_i32 : i32, i32
  }
  func.func @transform_1(%arg0: i32) -> (i32, i32) {
    %c0_i32 = arith.constant 0 : i32
    %c0_i32_0 = arith.constant 0 : i32
    return %arg0, %c0_i32 : i32, i32
  }
  func.func @transform_2(%arg0: i32) -> (i32, i32) {
    %c0_i32 = arith.constant 0 : i32
    %c0_i32_0 = arith.constant 0 : i32
    %c0_i32_1 = arith.constant 0 : i32
    return %c0_i32, %c0_i32_0 : i32, i32
  }
  func.func @transform_3(%arg0: i32) -> (i32, i32) {
    %c0_i32 = arith.constant 0 : i32
    %c0_i32_0 = arith.constant 0 : i32
    %c0_i32_1 = arith.constant 0 : i32
    return %c0_i32, %c0_i32_0 : i32, i32
  }
  func.func @transform_4(%arg0: i32) -> (i32, i32) {
    %c0_i32 = arith.constant 0 : i32
    %c0_i32_0 = arith.constant 0 : i32
    %c0_i32_1 = arith.constant 0 : i32
    return %c0_i32, %c0_i32_0 : i32, i32
  }
  func.func @transform_5(%arg0: i32) -> (i32, i32) {
    %c0_i32 = arith.constant 0 : i32
    %c0_i32_0 = arith.constant 0 : i32
    %c0_i32_1 = arith.constant 0 : i32
    return %c0_i32, %c0_i32_0 : i32, i32
  }
  func.func @transform_6(%arg0: i32) -> (i32, i32) {
    %c0_i32 = arith.constant 0 : i32
    %c0_i32_0 = arith.constant 0 : i32
    %c0_i32_1 = arith.constant 0 : i32
    return %c0_i32, %c0_i32_0 : i32, i32
  }
  func.func @transform_7(%arg0: i32) -> (i32, i32) {
    %c0_i32 = arith.constant 0 : i32
    %c0_i32_0 = arith.constant 0 : i32
    %c0_i32_1 = arith.constant 0 : i32
    return %c0_i32, %c0_i32_0 : i32, i32
  }
  func.func @transform_8(%arg0: i32) -> (i32, i32) {
    %c0_i32 = arith.constant 0 : i32
    %c0_i32_0 = arith.constant 0 : i32
    %c0_i32_1 = arith.constant 0 : i32
    return %c0_i32, %c0_i32_0 : i32, i32
  }
  func.func @transform_9(%arg0: i32) -> (i32, i32) {
    %c0_i32 = arith.constant 0 : i32
    %c0_i32_0 = arith.constant 0 : i32
    %c0_i32_1 = arith.constant 0 : i32
    return %c0_i32, %c0_i32_0 : i32, i32
  }
  func.func @transform_10(%arg0: i32) -> (i32, i32) {
    %c0_i32 = arith.constant 0 : i32
    %c0_i32_0 = arith.constant 0 : i32
    %c0_i32_1 = arith.constant 0 : i32
    return %c0_i32, %c0_i32_0 : i32, i32
  }
  func.func @transform_11(%arg0: i32) -> (i32, i32) {
    %c0_i32 = arith.constant 0 : i32
    %c0_i32_0 = arith.constant 0 : i32
    return %arg0, %c0_i32 : i32, i32
  }
}

</mosaic_0001>

<llo_original>
// kernel: mlp_planner_forward.1
$region0: #{mlp_planner_forward.1}
  #allocation0 [shape = 'u32[]', space=smem, size = 0x4, offset = 0x4, fixed_abs, tag = 'smem constant byte address 0x4 - core index']
  #allocation1 [shape = 'u32[144,128]{1,0:T(1,128)}', space=vmem, size = 0x12000, scoped, tag = 'internal scratch']
  %s0 = inlined_call_operand.vmem [shape: f32[16,20], index: 0, kind: input, shape index: {}]
  %s1 = inlined_call_operand.vmem [shape: f32[16,20], index: 1, kind: input, shape index: {}]
  %s2 = inlined_call_operand.vmem [shape: f32[20,128], index: 2, kind: input, shape index: {}]
  %s3 = inlined_call_operand.vmem [shape: f32[20,128], index: 3, kind: input, shape index: {}]
  %s4 = inlined_call_operand.vmem [shape: f32[1,128], index: 4, kind: input, shape index: {}]
  %s5 = inlined_call_operand.vmem [shape: f32[128,128], index: 5, kind: input, shape index: {}]
  %s6 = inlined_call_operand.vmem [shape: f32[1,128], index: 6, kind: input, shape index: {}]
  %s7 = inlined_call_operand.vmem [shape: f32[128,64], index: 7, kind: input, shape index: {}]
  %s8 = inlined_call_operand.vmem [shape: f32[1,64], index: 8, kind: input, shape index: {}]
  %s9 = inlined_call_operand.vmem [shape: f32[64,8], index: 9, kind: input, shape index: {}]
  %s10 = inlined_call_operand.vmem [shape: f32[1,8], index: 10, kind: input, shape index: {}]
  %s11 = inlined_call_operand.vmem [shape: f32[16,8], index: 11, kind: output, shape index: {}]
  %s12 = sld [smem:[#allocation0]]
  $region54: #{mlp_planner_forward.1} parent=0
    _
  %s14 = ssub.s32 1, %s12
  %s15 = scalar_select 0, %s14, %s12
  // Predicated region
  $region2: #{mlp_planner_forward.1} parent=0 // pred_check
    _
  $region3: #{mlp_planner_forward.1} parent=0 // pred_check_branch
    %17 = sbr.rel (0) target = $region5
  $region4: #{mlp_planner_forward.1} parent=0 // pred_region
    _
  $region5: #{mlp_planner_forward.1} parent=0 // pred_fallthru
    _
  // Predicated region
  $region6: #{mlp_planner_forward.1} parent=0 // pred_check
    _
  $region7: #{mlp_planner_forward.1} parent=0 // pred_check_branch
    %19 = sbr.rel (0) target = $region9
  $region8: #{mlp_planner_forward.1} parent=0 // pred_region
    _
  $region9: #{mlp_planner_forward.1} parent=0 // pred_fallthru
    _
  // Predicated region
  $region10: #{mlp_planner_forward.1} parent=0 // pred_check
    _
  $region11: #{mlp_planner_forward.1} parent=0 // pred_check_branch
    %21 = sbr.rel (0) target = $region13
  $region12: #{mlp_planner_forward.1} parent=0 // pred_region
    _
  $region13: #{mlp_planner_forward.1} parent=0 // pred_fallthru
    _
  // Predicated region
  $region14: #{mlp_planner_forward.1} parent=0 // pred_check
    _
  $region15: #{mlp_planner_forward.1} parent=0 // pred_check_branch
    %23 = sbr.rel (0) target = $region17
  $region16: #{mlp_planner_forward.1} parent=0 // pred_region
    _
  $region17: #{mlp_planner_forward.1} parent=0 // pred_fallthru
    _
  // Predicated region
  $region18: #{mlp_planner_forward.1} parent=0 // pred_check
    _
  $region19: #{mlp_planner_forward.1} parent=0 // pred_check_branch
    %25 = sbr.rel (0) target = $region21
  $region20: #{mlp_planner_forward.1} parent=0 // pred_region
    _
  $region21: #{mlp_planner_forward.1} parent=0 // pred_fallthru
    _
  // Predicated region
  $region22: #{mlp_planner_forward.1} parent=0 // pred_check
    _
  $region23: #{mlp_planner_forward.1} parent=0 // pred_check_branch
    %27 = sbr.rel (0) target = $region25
  $region24: #{mlp_planner_forward.1} parent=0 // pred_region
    _
  $region25: #{mlp_planner_forward.1} parent=0 // pred_fallthru
    _
  // Predicated region
  $region26: #{mlp_planner_forward.1} parent=0 // pred_check
    _
  $region27: #{mlp_planner_forward.1} parent=0 // pred_check_branch
    %29 = sbr.rel (0) target = $region29
  $region28: #{mlp_planner_forward.1} parent=0 // pred_region
    _
  $region29: #{mlp_planner_forward.1} parent=0 // pred_fallthru
    _
  // Predicated region
  $region30: #{mlp_planner_forward.1} parent=0 // pred_check
    _
  $region31: #{mlp_planner_forward.1} parent=0 // pred_check_branch
    %31 = sbr.rel (0) target = $region33
  $region32: #{mlp_planner_forward.1} parent=0 // pred_region
    _
  $region33: #{mlp_planner_forward.1} parent=0 // pred_fallthru
    _
  // Predicated region
  $region34: #{mlp_planner_forward.1} parent=0 // pred_check
    _
  $region35: #{mlp_planner_forward.1} parent=0 // pred_check_branch
    %33 = sbr.rel (0) target = $region37
  $region36: #{mlp_planner_forward.1} parent=0 // pred_region
    _
  $region37: #{mlp_planner_forward.1} parent=0 // pred_fallthru
    _
  // Predicated region
  $region38: #{mlp_planner_forward.1} parent=0 // pred_check
    _
  $region39: #{mlp_planner_forward.1} parent=0 // pred_check_branch
    %35 = sbr.rel (0) target = $region41
  $region40: #{mlp_planner_forward.1} parent=0 // pred_region
    _
  $region41: #{mlp_planner_forward.1} parent=0 // pred_fallthru
    _
  // Predicated region
  $region42: #{mlp_planner_forward.1} parent=0 // pred_check
    _
  $region43: #{mlp_planner_forward.1} parent=0 // pred_check_branch
    %37 = sbr.rel (0) target = $region45
  $region44: #{mlp_planner_forward.1} parent=0 // pred_region
    _
  $region45: #{mlp_planner_forward.1} parent=0 // pred_fallthru
    _
  %v38 = vld [vmem:[%s0] sm:$0xff]
  %v39 = vld [vmem:[%s0 + $0x8] sm:$0xff]
  %v40 = vld [vmem:[%s1] sm:$0xff]
  %v41 = vld [vmem:[%s1 + $0x8] sm:$0xff]
  %v42 = vld [vmem:[%s2] sm:$0xff]
  %v43 = vld [vmem:[%s2 + $0x8] sm:$0xff]
  %v44 = vld [vmem:[%s2 + $0x10] sm:$0xf]
  %v45 = vld [vmem:[%s3] sm:$0xff]
  %v46 = vld [vmem:[%s3 + $0x8] sm:$0xff]
  %v47 = vld [vmem:[%s3 + $0x10] sm:$0xf]
  %vm48 = vcmask 162816
  %v50 = vsel %vm48, %v40, 0
  %v53 = vsel %vm48, %v41, 0
  %vm55 = vcmask 1043456
  %v57 = vsel %vm55, %v47, 0
  %59 = vmatprep.subr.mxu0 0.0
  %60 = vmatpush1.msra.mxu0 0.0
  %61 = vmatprep.subr.mxu0 0.0
  %62 = vmatpush1.msra.mxu0 0.0
  %63 = vmatprep.subr.mxu0 0.0
  %64 = vmatpush1.msra.mxu0 0.0
  %65 = vmatprep.subr.mxu0 0.0
  %66 = vmatpush1.msra.mxu0 0.0
  %67 = vmatprep.subr.mxu0 0.0
  %68 = vmatpush1.msra.mxu0 0.0
  %69 = vmatprep.subr.mxu0 0.0
  %70 = vmatpush1.msra.mxu0 0.0
  %71 = vmatprep.subr.mxu0 0.0
  %72 = vmatpush1.msra.mxu0 0.0
  %73 = vmatprep.subr.mxu0 0.0
  %74 = vmatpush1.msra.mxu0 0.0
  %75 = vmatprep.subr.mxu0 0.0
  %76 = vmatpush1.msra.mxu0 0.0
  %77 = vmatprep.subr.mxu0 0.0
  %78 = vmatpush1.msra.mxu0 0.0
  %79 = vmatprep.subr.mxu0 0.0
  %80 = vmatpush1.msra.mxu0 0.0
  %81 = vmatprep.subr.mxu0 0.0
  %82 = vmatpush1.msra.mxu0 0.0
  %83 = vmatprep.subr.mxu0 0.0
  %84 = vmatpush1.msra.mxu0 0.0
  %85 = vmatprep.subr.mxu0 0.0
  %86 = vmatpush1.msra.mxu0 %v57
  %87 = vmatprep.subr.mxu0 0.0
  %88 = vmatpush1.msra.mxu0 %v46
  %89 = vmatprep.subr.mxu0 0.0
  %90 = vmatpush1.msra.mxu0 %v45
  %91 = vmatprep.subr.mxu0 0.0
  %92 = vmatpush2.msra.mxu0 0.0
  %93 = vmatprep.subr.mxu0 0.0
  %94 = vmatpush2.msra.mxu0 0.0
  %95 = vmatprep.subr.mxu0 0.0
  %96 = vmatpush2.msra.mxu0 0.0
  %97 = vmatprep.subr.mxu0 0.0
  %98 = vmatpush2.msra.mxu0 0.0
  %99 = vmatprep.subr.mxu0 0.0
  %100 = vmatpush2.msra.mxu0 0.0
  %101 = vmatprep.subr.mxu0 0.0
  %102 = vmatpush2.msra.mxu0 0.0
  %103 = vmatprep.subr.mxu0 0.0
  %104 = vmatpush2.msra.mxu0 0.0
  %105 = vmatprep.subr.mxu0 0.0
  %106 = vmatpush2.msra.mxu0 0.0
  %107 = vmatprep.subr.mxu0 0.0
  %108 = vmatpush2.msra.mxu0 0.0
  %109 = vmatprep.subr.mxu0 0.0
  %110 = vmatpush2.msra.mxu0 0.0
  %111 = vmatprep.subr.mxu0 0.0
  %112 = vmatpush2.msra.mxu0 0.0
  %113 = vmatprep.subr.mxu0 0.0
  %114 = vmatpush2.msra.mxu0 0.0
  %115 = vmatprep.subr.mxu0 0.0
  %116 = vmatpush2.msra.mxu0 0.0
  %117 = vmatprep.subr.mxu0 0.0
  %118 = vmatpush2.msra.mxu0 0.0
  %119 = vmatprep.subr.mxu0 0.0
  %120 = vmatpush2.msra.mxu0 0.0
  %121 = vmatprep.subr.mxu0 0.0
  %122 = vmatpush2.msra.mxu0 0.0
  %123 = vmatprep.mubr.f32.mxu0 0.0
  %124 = vmatmul.mubr.f32.gmra.mxu0 %v50
  %v125 = vpop.f32.mrf.mxu0
  %v126 = vadd.f32 0.0, %v125
  %v127 = vpop.f32.mrf.mxu0
  %128 = vmatprep.mubr.f32.mxu0 0.0
  %129 = vmatmul.mubr.f32.gmra.mxu0 %v53
  %v130 = vpop.f32.mrf.mxu0
  %v131 = vadd.f32 0.0, %v130
  %v132 = vpop.f32.mrf.mxu0
  %133 = vdwg.mxu0
  %v135 = vsel %vm48, %v38, 0
  %v138 = vsel %vm48, %v39, 0
  %v141 = vsel %vm55, %v44, 0
  %143 = vmatprep.subr.mxu0 0.0
  %144 = vmatpush1.msra.mxu0 0.0
  %145 = vmatprep.subr.mxu0 0.0
  %146 = vmatpush1.msra.mxu0 0.0
  %147 = vmatprep.subr.mxu0 0.0
  %148 = vmatpush1.msra.mxu0 0.0
  %149 = vmatprep.subr.mxu0 0.0
  %150 = vmatpush1.msra.mxu0 0.0
  %151 = vmatprep.subr.mxu0 0.0
  %152 = vmatpush1.msra.mxu0 0.0
  %153 = vmatprep.subr.mxu0 0.0
  %154 = vmatpush1.msra.mxu0 0.0
  %155 = vmatprep.subr.mxu0 0.0
  %156 = vmatpush1.msra.mxu0 0.0
  %157 = vmatprep.subr.mxu0 0.0
  %158 = vmatpush1.msra.mxu0 0.0
  %159 = vmatprep.subr.mxu0 0.0
  %160 = vmatpush1.msra.mxu0 0.0
  %161 = vmatprep.subr.mxu0 0.0
  %162 = vmatpush1.msra.mxu0 0.0
  %163 = vmatprep.subr.mxu0 0.0
  %164 = vmatpush1.msra.mxu0 0.0
  %165 = vmatprep.subr.mxu0 0.0
  %166 = vmatpush1.msra.mxu0 0.0
  %167 = vmatprep.subr.mxu0 0.0
  %168 = vmatpush1.msra.mxu0 0.0
  %169 = vmatprep.subr.mxu0 0.0
  %170 = vmatpush1.msra.mxu0 %v141
  %171 = vmatprep.subr.mxu0 0.0
  %172 = vmatpush1.msra.mxu0 %v43
  %173 = vmatprep.subr.mxu0 0.0
  %174 = vmatpush1.msra.mxu0 %v42
  %175 = vmatprep.subr.mxu0 0.0
  %176 = vmatpush2.msra.mxu0 0.0
  %177 = vmatprep.subr.mxu0 0.0
  %178 = vmatpush2.msra.mxu0 0.0
  %179 = vmatprep.subr.mxu0 0.0
  %180 = vmatpush2.msra.mxu0 0.0
  %181 = vmatprep.subr.mxu0 0.0
  %182 = vmatpush2.msra.mxu0 0.0
  %183 = vmatprep.subr.mxu0 0.0
  %184 = vmatpush2.msra.mxu0 0.0
  %185 = vmatprep.subr.mxu0 0.0
  %186 = vmatpush2.msra.mxu0 0.0
  %187 = vmatprep.subr.mxu0 0.0
  %188 = vmatpush2.msra.mxu0 0.0
  %189 = vmatprep.subr.mxu0 0.0
  %190 = vmatpush2.msra.mxu0 0.0
  %191 = vmatprep.subr.mxu0 0.0
  %192 = vmatpush2.msra.mxu0 0.0
  %193 = vmatprep.subr.mxu0 0.0
  %194 = vmatpush2.msra.mxu0 0.0
  %195 = vmatprep.subr.mxu0 0.0
  %196 = vmatpush2.msra.mxu0 0.0
  %197 = vmatprep.subr.mxu0 0.0
  %198 = vmatpush2.msra.mxu0 0.0
  %199 = vmatprep.subr.mxu0 0.0
  %200 = vmatpush2.msra.mxu0 0.0
  %201 = vmatprep.subr.mxu0 0.0
  %202 = vmatpush2.msra.mxu0 0.0
  %203 = vmatprep.subr.mxu0 0.0
  %204 = vmatpush2.msra.mxu0 0.0
  %205 = vmatprep.subr.mxu0 0.0
  %206 = vmatpush2.msra.mxu0 0.0
  %207 = vmatprep.mubr.f32.mxu0 0.0
  %208 = vmatmul.mubr.f32.gmra.mxu0 %v135
  %v209 = vpop.f32.mrf.mxu0
  %v210 = vadd.f32 %v126, %v209
  %v211 = vpop.f32.mrf.mxu0
  %212 = vmatprep.mubr.f32.mxu0 0.0
  %213 = vmatmul.mubr.f32.gmra.mxu0 %v138
  %v214 = vpop.f32.mrf.mxu0
  %v215 = vadd.f32 %v131, %v214
  %v216 = vpop.f32.mrf.mxu0
  %217 = vdwg.mxu0
  %v218 = vld [vmem:[%s4] sm:$0x1]
  %v220 = vlaneseq
  %v221 = vshrl.u32 %v220, 7
  %v222 = vsub.s32 0, %v221
  %v223 = vrot.slane %v218, %v222
  %v225 = vadd.f32 %v210, %v223
  %v226 = vadd.f32 %v215, %v223
  %v227 = vmax.f32 %v225, 0.0
  %v228 = vmax.f32 %v226, 0.0
  %v229 = vld [vmem:[%s5] sm:$0xff]
  %v230 = vld [vmem:[%s5 + $0x8] sm:$0xff]
  %v231 = vld [vmem:[%s5 + $0x10] sm:$0xff]
  %v232 = vld [vmem:[%s5 + $0x18] sm:$0xff]
  %v233 = vld [vmem:[%s5 + $0x20] sm:$0xff]
  %v234 = vld [vmem:[%s5 + $0x28] sm:$0xff]
  %v235 = vld [vmem:[%s5 + $0x30] sm:$0xff]
  %v236 = vld [vmem:[%s5 + $0x38] sm:$0xff]
  %v237 = vld [vmem:[%s5 + $0x40] sm:$0xff]
  %v238 = vld [vmem:[%s5 + $0x48] sm:$0xff]
  %v239 = vld [vmem:[%s5 + $0x50] sm:$0xff]
  %v240 = vld [vmem:[%s5 + $0x58] sm:$0xff]
  %v241 = vld [vmem:[%s5 + $0x60] sm:$0xff]
  %v242 = vld [vmem:[%s5 + $0x68] sm:$0xff]
  %v243 = vld [vmem:[%s5 + $0x70] sm:$0xff]
  %v244 = vld [vmem:[%s5 + $0x78] sm:$0xff]
  %v245 = vld [vmem:[%s6] sm:$0x1]
  %v247 = vlaneseq
  %v248 = vshrl.u32 %v247, 7
  %v249 = vsub.s32 0, %v248
  %v250 = vrot.slane %v245, %v249
  %252 = vmatprep.subr.mxu0 0.0
  %253 = vmatpush1.msra.mxu0 %v244
  %254 = vmatprep.subr.mxu0 0.0
  %255 = vmatpush1.msra.mxu0 %v243
  %256 = vmatprep.subr.mxu0 0.0
  %257 = vmatpush1.msra.mxu0 %v242
  %258 = vmatprep.subr.mxu0 0.0
  %259 = vmatpush1.msra.mxu0 %v241
  %260 = vmatprep.subr.mxu0 0.0
  %261 = vmatpush1.msra.mxu0 %v240
  %262 = vmatprep.subr.mxu0 0.0
  %263 = vmatpush1.msra.mxu0 %v239
  %264 = vmatprep.subr.mxu0 0.0
  %265 = vmatpush1.msra.mxu0 %v238
  %266 = vmatprep.subr.mxu0 0.0
  %267 = vmatpush1.msra.mxu0 %v237
  %268 = vmatprep.subr.mxu0 0.0
  %269 = vmatpush1.msra.mxu0 %v236
  %270 = vmatprep.subr.mxu0 0.0
  %271 = vmatpush1.msra.mxu0 %v235
  %272 = vmatprep.subr.mxu0 0.0
  %273 = vmatpush1.msra.mxu0 %v234
  %274 = vmatprep.subr.mxu0 0.0
  %275 = vmatpush1.msra.mxu0 %v233
  %276 = vmatprep.subr.mxu0 0.0
  %277 = vmatpush1.msra.mxu0 %v232
  %278 = vmatprep.subr.mxu0 0.0
  %279 = vmatpush1.msra.mxu0 %v231
  %280 = vmatprep.subr.mxu0 0.0
  %281 = vmatpush1.msra.mxu0 %v230
  %282 = vmatprep.subr.mxu0 0.0
  %283 = vmatpush1.msra.mxu0 %v229
  %284 = vmatprep.subr.mxu0 0.0
  %285 = vmatpush2.msra.mxu0 0.0
  %286 = vmatprep.subr.mxu0 0.0
  %287 = vmatpush2.msra.mxu0 0.0
  %288 = vmatprep.subr.mxu0 0.0
  %289 = vmatpush2.msra.mxu0 0.0
  %290 = vmatprep.subr.mxu0 0.0
  %291 = vmatpush2.msra.mxu0 0.0
  %292 = vmatprep.subr.mxu0 0.0
  %293 = vmatpush2.msra.mxu0 0.0
  %294 = vmatprep.subr.mxu0 0.0
  %295 = vmatpush2.msra.mxu0 0.0
  %296 = vmatprep.subr.mxu0 0.0
  %297 = vmatpush2.msra.mxu0 0.0
  %298 = vmatprep.subr.mxu0 0.0
  %299 = vmatpush2.msra.mxu0 0.0
  %300 = vmatprep.subr.mxu0 0.0
  %301 = vmatpush2.msra.mxu0 0.0
  %302 = vmatprep.subr.mxu0 0.0
  %303 = vmatpush2.msra.mxu0 0.0
  %304 = vmatprep.subr.mxu0 0.0
  %305 = vmatpush2.msra.mxu0 0.0
  %306 = vmatprep.subr.mxu0 0.0
  %307 = vmatpush2.msra.mxu0 0.0
  %308 = vmatprep.subr.mxu0 0.0
  %309 = vmatpush2.msra.mxu0 0.0
  %310 = vmatprep.subr.mxu0 0.0
  %311 = vmatpush2.msra.mxu0 0.0
  %312 = vmatprep.subr.mxu0 0.0
  %313 = vmatpush2.msra.mxu0 0.0
  %314 = vmatprep.subr.mxu0 0.0
  %315 = vmatpush2.msra.mxu0 0.0
  %316 = vmatprep.mubr.f32.mxu0 0.0
  %317 = vmatmul.mubr.f32.gmra.mxu0 %v227
  %v318 = vpop.f32.mrf.mxu0
  %v319 = vadd.f32 %v250, %v318
  %v320 = vpop.f32.mrf.mxu0
  %321 = vmatprep.mubr.f32.mxu0 0.0
  %322 = vmatmul.mubr.f32.gmra.mxu0 %v228
  %v323 = vpop.f32.mrf.mxu0
  %v324 = vadd.f32 %v250, %v323
  %v325 = vpop.f32.mrf.mxu0
  %326 = vdwg.mxu0
  %v327 = vmax.f32 %v319, 0.0
  %v328 = vmax.f32 %v324, 0.0
  %v329 = vld [vmem:[%s7] sm:$0xff]
  %v330 = vld [vmem:[%s7 + $0x8] sm:$0xff]
  %v331 = vld [vmem:[%s7 + $0x10] sm:$0xff]
  %v332 = vld [vmem:[%s7 + $0x18] sm:$0xff]
  %v333 = vld [vmem:[%s7 + $0x20] sm:$0xff]
  %v334 = vld [vmem:[%s7 + $0x28] sm:$0xff]
  %v335 = vld [vmem:[%s7 + $0x30] sm:$0xff]
  %v336 = vld [vmem:[%s7 + $0x38] sm:$0xff]
  %v337 = vld [vmem:[%s7 + $0x40] sm:$0xff]
  %v338 = vld [vmem:[%s7 + $0x48] sm:$0xff]
  %v339 = vld [vmem:[%s7 + $0x50] sm:$0xff]
  %v340 = vld [vmem:[%s7 + $0x58] sm:$0xff]
  %v341 = vld [vmem:[%s7 + $0x60] sm:$0xff]
  %v342 = vld [vmem:[%s7 + $0x68] sm:$0xff]
  %v343 = vld [vmem:[%s7 + $0x70] sm:$0xff]
  %v344 = vld [vmem:[%s7 + $0x78] sm:$0xff]
  %v345 = vld [vmem:[%s8] sm:$0x1]
  %v347 = vlaneseq
  %v348 = vshrl.u32 %v347, 7
  %v349 = vsub.s32 0, %v348
  %v350 = vrot.slane %v345, %v349
  %352 = vmatprep.subr.mxu0 0.0
  %353 = vmatpush1.msra.mxu0 %v344
  %354 = vmatprep.subr.mxu0 0.0
  %355 = vmatpush1.msra.mxu0 %v343
  %356 = vmatprep.subr.mxu0 0.0
  %357 = vmatpush1.msra.mxu0 %v342
  %358 = vmatprep.subr.mxu0 0.0
  %359 = vmatpush1.msra.mxu0 %v341
  %360 = vmatprep.subr.mxu0 0.0
  %361 = vmatpush1.msra.mxu0 %v340
  %362 = vmatprep.subr.mxu0 0.0
  %363 = vmatpush1.msra.mxu0 %v339
  %364 = vmatprep.subr.mxu0 0.0
  %365 = vmatpush1.msra.mxu0 %v338
  %366 = vmatprep.subr.mxu0 0.0
  %367 = vmatpush1.msra.mxu0 %v337
  %368 = vmatprep.subr.mxu0 0.0
  %369 = vmatpush1.msra.mxu0 %v336
  %370 = vmatprep.subr.mxu0 0.0
  %371 = vmatpush1.msra.mxu0 %v335
  %372 = vmatprep.subr.mxu0 0.0
  %373 = vmatpush1.msra.mxu0 %v334
  %374 = vmatprep.subr.mxu0 0.0
  %375 = vmatpush1.msra.mxu0 %v333
  %376 = vmatprep.subr.mxu0 0.0
  %377 = vmatpush1.msra.mxu0 %v332
  %378 = vmatprep.subr.mxu0 0.0
  %379 = vmatpush1.msra.mxu0 %v331
  %380 = vmatprep.subr.mxu0 0.0
  %381 = vmatpush1.msra.mxu0 %v330
  %382 = vmatprep.subr.mxu0 0.0
  %383 = vmatpush1.msra.mxu0 %v329
  %384 = vmatprep.subr.mxu0 0.0
  %385 = vmatpush2.msra.mxu0 0.0
  %386 = vmatprep.subr.mxu0 0.0
  %387 = vmatpush2.msra.mxu0 0.0
  %388 = vmatprep.subr.mxu0 0.0
  %389 = vmatpush2.msra.mxu0 0.0
  %390 = vmatprep.subr.mxu0 0.0
  %391 = vmatpush2.msra.mxu0 0.0
  %392 = vmatprep.subr.mxu0 0.0
  %393 = vmatpush2.msra.mxu0 0.0
  %394 = vmatprep.subr.mxu0 0.0
  %395 = vmatpush2.msra.mxu0 0.0
  %396 = vmatprep.subr.mxu0 0.0
  %397 = vmatpush2.msra.mxu0 0.0
  %398 = vmatprep.subr.mxu0 0.0
  %399 = vmatpush2.msra.mxu0 0.0
  %400 = vmatprep.subr.mxu0 0.0
  %401 = vmatpush2.msra.mxu0 0.0
  %402 = vmatprep.subr.mxu0 0.0
  %403 = vmatpush2.msra.mxu0 0.0
  %404 = vmatprep.subr.mxu0 0.0
  %405 = vmatpush2.msra.mxu0 0.0
  %406 = vmatprep.subr.mxu0 0.0
  %407 = vmatpush2.msra.mxu0 0.0
  %408 = vmatprep.subr.mxu0 0.0
  %409 = vmatpush2.msra.mxu0 0.0
  %410 = vmatprep.subr.mxu0 0.0
  %411 = vmatpush2.msra.mxu0 0.0
  %412 = vmatprep.subr.mxu0 0.0
  %413 = vmatpush2.msra.mxu0 0.0
  %414 = vmatprep.subr.mxu0 0.0
  %415 = vmatpush2.msra.mxu0 0.0
  %416 = vmatprep.mubr.f32.mxu0 0.0
  %417 = vmatmul.mubr.f32.gmra.mxu0 %v327
  %v418 = vpop.f32.mrf.mxu0
  %v419 = vadd.f32 %v350, %v418
  %v420 = vpop.f32.mrf.mxu0
  %421 = vmatprep.mubr.f32.mxu0 0.0
  %422 = vmatmul.mubr.f32.gmra.mxu0 %v328
  %v423 = vpop.f32.mrf.mxu0
  %v424 = vadd.f32 %v350, %v423
  %v425 = vpop.f32.mrf.mxu0
  %426 = vdwg.mxu0
  %v427 = vmax.f32 %v419, 0.0
  %v428 = vmax.f32 %v424, 0.0
  %v429 = vld [vmem:[%s9] sm:$0xff]
  %v430 = vld [vmem:[%s9 + $0x8] sm:$0xff]
  %v431 = vld [vmem:[%s9 + $0x10] sm:$0xff]
  %v432 = vld [vmem:[%s9 + $0x18] sm:$0xff]
  %v433 = vld [vmem:[%s9 + $0x20] sm:$0xff]
  %v434 = vld [vmem:[%s9 + $0x28] sm:$0xff]
  %v435 = vld [vmem:[%s9 + $0x30] sm:$0xff]
  %v436 = vld [vmem:[%s9 + $0x38] sm:$0xff]
  %v437 = vld [vmem:[%s10] sm:$0x1]
  %v439 = vlaneseq
  %v440 = vshrl.u32 %v439, 7
  %v441 = vsub.s32 0, %v440
  %v442 = vrot.slane %v437, %v441
  %vm444 = vcmask 523264
  %v446 = vsel %vm444, %v427, 0
  %v449 = vsel %vm444, %v428, 0
  %451 = vmatprep.subr.mxu0 0.0
  %452 = vmatpush1.msra.mxu0 0.0
  %453 = vmatprep.subr.mxu0 0.0
  %454 = vmatpush1.msra.mxu0 0.0
  %455 = vmatprep.subr.mxu0 0.0
  %456 = vmatpush1.msra.mxu0 0.0
  %457 = vmatprep.subr.mxu0 0.0
  %458 = vmatpush1.msra.mxu0 0.0
  %459 = vmatprep.subr.mxu0 0.0
  %460 = vmatpush1.msra.mxu0 0.0
  %461 = vmatprep.subr.mxu0 0.0
  %462 = vmatpush1.msra.mxu0 0.0
  %463 = vmatprep.subr.mxu0 0.0
  %464 = vmatpush1.msra.mxu0 0.0
  %465 = vmatprep.subr.mxu0 0.0
  %466 = vmatpush1.msra.mxu0 0.0
  %467 = vmatprep.subr.mxu0 0.0
  %468 = vmatpush1.msra.mxu0 %v436
  %469 = vmatprep.subr.mxu0 0.0
  %470 = vmatpush1.msra.mxu0 %v435
  %471 = vmatprep.subr.mxu0 0.0
  %472 = vmatpush1.msra.mxu0 %v434
  %473 = vmatprep.subr.mxu0 0.0
  %474 = vmatpush1.msra.mxu0 %v433
  %475 = vmatprep.subr.mxu0 0.0
  %476 = vmatpush1.msra.mxu0 %v432
  %477 = vmatprep.subr.mxu0 0.0
  %478 = vmatpush1.msra.mxu0 %v431
  %479 = vmatprep.subr.mxu0 0.0
  %480 = vmatpush1.msra.mxu0 %v430
  %481 = vmatprep.subr.mxu0 0.0
  %482 = vmatpush1.msra.mxu0 %v429
  %483 = vmatprep.subr.mxu0 0.0
  %484 = vmatpush2.msra.mxu0 0.0
  %485 = vmatprep.subr.mxu0 0.0
  %486 = vmatpush2.msra.mxu0 0.0
  %487 = vmatprep.subr.mxu0 0.0
  %488 = vmatpush2.msra.mxu0 0.0
  %489 = vmatprep.subr.mxu0 0.0
  %490 = vmatpush2.msra.mxu0 0.0
  %491 = vmatprep.subr.mxu0 0.0
  %492 = vmatpush2.msra.mxu0 0.0
  %493 = vmatprep.subr.mxu0 0.0
  %494 = vmatpush2.msra.mxu0 0.0
  %495 = vmatprep.subr.mxu0 0.0
  %496 = vmatpush2.msra.mxu0 0.0
  %497 = vmatprep.subr.mxu0 0.0
  %498 = vmatpush2.msra.mxu0 0.0
  %499 = vmatprep.subr.mxu0 0.0
  %500 = vmatpush2.msra.mxu0 0.0
  %501 = vmatprep.subr.mxu0 0.0
  %502 = vmatpush2.msra.mxu0 0.0
  %503 = vmatprep.subr.mxu0 0.0
  %504 = vmatpush2.msra.mxu0 0.0
  %505 = vmatprep.subr.mxu0 0.0
  %506 = vmatpush2.msra.mxu0 0.0
  %507 = vmatprep.subr.mxu0 0.0
  %508 = vmatpush2.msra.mxu0 0.0
  %509 = vmatprep.subr.mxu0 0.0
  %510 = vmatpush2.msra.mxu0 0.0
  %511 = vmatprep.subr.mxu0 0.0
  %512 = vmatpush2.msra.mxu0 0.0
  %513 = vmatprep.subr.mxu0 0.0
  %514 = vmatpush2.msra.mxu0 0.0
  %515 = vmatprep.mubr.f32.mxu0 0.0
  %516 = vmatmul.mubr.f32.gmra.mxu0 %v446
  %v517 = vpop.f32.mrf.mxu0
  %v518 = vadd.f32 %v442, %v517
  %v519 = vpop.f32.mrf.mxu0
  %520 = vmatprep.mubr.f32.mxu0 0.0
  %521 = vmatmul.mubr.f32.gmra.mxu0 %v449
  %v522 = vpop.f32.mrf.mxu0
  %v523 = vadd.f32 %v442, %v522
  %v524 = vpop.f32.mrf.mxu0
  %525 = vdwg.mxu0
  %vm526 = vcmask 64512
  %527 = vst.msk [vmem:[%s11] sm:$0xff] %vm526, %v518
  %528 = vst.msk [vmem:[%s11 + $0x8] sm:$0xff] %vm526, %v523
  // Predicated region
  $region46: #{mlp_planner_forward.1} parent=0 // pred_check
    _
  $region47: #{mlp_planner_forward.1} parent=0 // pred_check_branch
    %530 = sbr.rel (0) target = $region49
  $region48: #{mlp_planner_forward.1} parent=0 // pred_region
    _
  $region49: #{mlp_planner_forward.1} parent=0 // pred_fallthru
    _
  // Predicated region
  $region50: #{mlp_planner_forward.1} parent=0 // pred_check
    _
  $region51: #{mlp_planner_forward.1} parent=0 // pred_check_branch
    %532 = sbr.rel (0) target = $region53
  $region52: #{mlp_planner_forward.1} parent=0 // pred_region
    _
  $region53: #{mlp_planner_forward.1} parent=0 // pred_fallthru
    _

</llo_original>
